<compile_context>
chip_gen: v6e
topology: v6e:2x2x1
jax: 0.10.0
libtpu: 0.0.40
codegen_flags: <defaults>
</compile_context>

<pallas_src>
import jax
import jax.numpy as jnp
from jax.experimental import pallas as pl
from jax.experimental.pallas import tpu as pltpu


# ----------------------------- Pallas kernel ------------------------------- #

def _bilstm_last_kernel(x_ref,             # (T*Bp, D)  time-major, row = t*Bp + b
                        h0f_ref, c0f_ref,  # (Bp, H)   forward-direction initial state
                        h0b_ref, c0b_ref,  # (Bp, H)   backward-direction initial state
                        wih_ref,           # (D, 8H)   [fwd | bwd], gate cols [i, f, o, g]
                        whh_f_ref,         # (H, 4H)   gate cols [i, f, o, g]
                        whh_b_ref,         # (H, 4H)
                        b_ref,             # (1, 8H)   b_ih + b_hh folded, [fwd | bwd]
                        out_ref):          # (Bp, 2H)
    Bp = h0f_ref.shape[0]
    H = h0f_ref.shape[1]
    T = x_ref.shape[0] // Bp
    G = 4 * H

    # Hoisted input projection + bias fold: ONE matmul for every timestep and
    # both directions, done once off the recurrence's critical path.
    gx = (jnp.dot(x_ref[...], wih_ref[...], preferred_element_type=jnp.float32)
          + b_ref[...])                                   # (T*Bp, 8H)

    whh_f = whh_f_ref[...]
    whh_b = whh_b_ref[...]

    def step(gx_t, h, c, whh):
        # Single dependent dot per step; gates laid out [i, f, o, g] so the
        # three sigmoid gates are one contiguous 3H-lane EUP pass.
        gates = gx_t + jnp.dot(h, whh, preferred_element_type=jnp.float32)
        sig = jax.nn.sigmoid(gates[:, :3 * H])            # i | f | o
        g = jnp.tanh(gates[:, 3 * H:])                    # g
        c_new = sig[:, H:2 * H] * c + sig[:, :H] * g
        h_new = sig[:, 2 * H:3 * H] * jnp.tanh(c_new)
        return h_new, c_new

    # Backward-direction output at sequence position T-1 == exactly one cell
    # step on x[T-1] from the backward initial state. It is independent of the
    # forward chain, so issue it first and let it hide under forward stalls.
    h_b, _ = step(gx[(T - 1) * Bp:, G:], h0b_ref[...], c0b_ref[...], whh_b)

    # Forward recurrence, fully unrolled (T is small and static) so the whole
    # dependence chain is visible to the scheduler. All row slices are static
    # and sublane-aligned (Bp == 8).
    h, c = h0f_ref[...], c0f_ref[...]
    for t in range(T):
        h, c = step(gx[t * Bp:(t + 1) * Bp, :G], h, c, whh_f)

    # Single (Bp, 2H) store.
    out_ref[...] = jnp.concatenate([h, h_b], axis=1)


# ------------------------------- Wrapper ------------------------------------ #

def temp_encoder_forward(x, params, h0, c0):
    """x: (B, T, D) float32 (PyTorch batch_first). h0, c0: (2, B, H).
    Returns out[:, -1, :] of the bidirectional LSTM: shape (B, 2H)."""
    B, T, D = x.shape
    H = params["whh_f"].shape[0]

    # Pad batch to a sublane multiple so every per-timestep tile inside the
    # kernel is a full, aligned sublane group. Padded rows are sliced off below.
    Bp = max(8, ((B + 7) // 8) * 8)
    pad = Bp - B
    xp = jnp.pad(x, ((0, pad), (0, 0), (0, 0)))
    h0p = jnp.pad(h0, ((0, 0), (0, pad), (0, 0)))
    c0p = jnp.pad(c0, ((0, 0), (0, pad), (0, 0)))

    # Time-major flatten so each timestep's gate rows are contiguous inside
    # the kernel (row index = t*Bp + b). Tiny (T*Bp, D) copy, done once by XLA.
    x_flat = jnp.transpose(xp, (1, 0, 2)).reshape(T * Bp, D)

    vmem = pl.BlockSpec(memory_space=pltpu.MemorySpace.VMEM)
    out = pl.pallas_call(
        _bilstm_last_kernel,
        out_shape=jax.ShapeDtypeStruct((Bp, 2 * H), jnp.float32),
        in_specs=[vmem] * 9,
        out_specs=vmem,
    )(
        x_flat,
        h0p[0], c0p[0],          # forward-direction initial state
        h0p[1], c0p[1],          # backward-direction initial state
        params["wih"], params["whh_f"], params["whh_b"], params["b"],
    )
    return out[:B]


# ------------------------- Deterministic parameters ------------------------- #

def init_params(key, input_size, hidden):
    """LSTM params, PyTorch-style U(-1/sqrt(H), 1/sqrt(H)) init.

    Storage layout expected by the kernel (if importing real PyTorch weights,
    transpose (4H, in) -> (in, 4H), permute gate rows/cols from PyTorch's
    (i, f, g, o) to (i, f, o, g), fold b = b_ih + b_hh, and concatenate the
    forward/backward input projections along the output axis):
      wih   : (in, 8H)  = [W_ih_fwd | W_ih_bwd], gate cols [i, f, o, g]
      whh_f : (H, 4H), whh_b : (H, 4H)           gate cols [i, f, o, g]
      b     : (1, 8H)   = [b_fwd | b_bwd]
    """
    k = 1.0 / jnp.sqrt(jnp.float32(hidden))
    keys = jax.random.split(key, 8)

    def u(kk, shape):
        return jax.random.uniform(kk, shape, jnp.float32, minval=-k, maxval=k)

    G = 4 * hidden
    wih = jnp.concatenate([u(keys[0], (input_size, G)),
                           u(keys[1], (input_size, G))], axis=1)
    b = jnp.concatenate([u(keys[2], (1, G)) + u(keys[3], (1, G)),
                         u(keys[4], (1, G)) + u(keys[5], (1, G))], axis=1)
    return {
        "wih": wih,
        "whh_f": u(keys[6], (hidden, G)),
        "whh_b": u(keys[7], (hidden, G)),
        "b": b,
    }


# --------------------------------- Main -------------------------------------- #

if __name__ == "__main__":
    # RootVariables (synthetic, small): hidden_size=32, num_layers=2, batch_size=2
    BATCH = 2
    SEQ = 8
    INPUT_SIZE = 8
    HIDDEN = 16          # hidden_size // 2 (per direction)
    NUM_STATES = 2       # num_layers * num_directions for the state tensors

    root = jax.random.PRNGKey(0)
    k_x, k_h0, k_c0, k_p = jax.random.split(root, 4)

    x = jax.random.normal(k_x, (BATCH, SEQ, INPUT_SIZE), jnp.float32)
    # torch.randn h0/c0 in the PyTorch forward -> deterministic normals here.
    h0 = jax.random.normal(k_h0, (NUM_STATES, BATCH, HIDDEN), jnp.float32)
    c0 = jax.random.normal(k_c0, (NUM_STATES, BATCH, HIDDEN), jnp.float32)

    params = init_params(k_p, INPUT_SIZE, HIDDEN)

    out = temp_encoder_forward(x, params, h0, c0)
    out = jax.block_until_ready(out)

    assert out.shape == (BATCH, 2 * HIDDEN), out.shape
    assert jnp.all(jnp.isfinite(out))
    print("KERNEL_OK")
</pallas_src>

<mosaic_0001>
module attributes {stable_mosaic.version = 11 : i64} {
  func.func @_bilstm_last_kernel(%arg0: memref<64x8xf32, #tpu.memory_space<vmem>>, %arg1: memref<8x16xf32, #tpu.memory_space<vmem>>, %arg2: memref<8x16xf32, #tpu.memory_space<vmem>>, %arg3: memref<8x16xf32, #tpu.memory_space<vmem>>, %arg4: memref<8x16xf32, #tpu.memory_space<vmem>>, %arg5: memref<8x128xf32, #tpu.memory_space<vmem>>, %arg6: memref<16x64xf32, #tpu.memory_space<vmem>>, %arg7: memref<16x64xf32, #tpu.memory_space<vmem>>, %arg8: memref<1x128xf32, #tpu.memory_space<vmem>>, %arg9: memref<8x32xf32, #tpu.memory_space<vmem>>) attributes {dimension_semantics = [], scalar_prefetch = 0 : i64, scratch_operands = 0 : i64, tpu.core_type = #tpu.core_type<tc>} {
    %c0 = arith.constant 0 : index
    %c0_0 = arith.constant 0 : index
    %0 = vector.load %arg0[%c0, %c0_0] : memref<64x8xf32, #tpu.memory_space<vmem>>, vector<64x8xf32>
    %c0_1 = arith.constant 0 : index
    %c0_2 = arith.constant 0 : index
    %1 = vector.load %arg5[%c0_1, %c0_2] : memref<8x128xf32, #tpu.memory_space<vmem>>, vector<8x128xf32>
    %cst = arith.constant dense<0.000000e+00> : vector<64x128xf32>
    %2 = tpu.matmul %0, %1, %cst {dimension_numbers = #tpu.dot_dimension_numbers<[1], [0], [0], [1], [0, 0, 1, 1], [], []>} : vector<64x8xf32>, vector<8x128xf32>, vector<64x128xf32> -> vector<64x128xf32>
    %c0_3 = arith.constant 0 : index
    %c0_4 = arith.constant 0 : index
    %3 = vector.load %arg8[%c0_3, %c0_4] : memref<1x128xf32, #tpu.memory_space<vmem>>, vector<1x128xf32>
    %4 = vector.broadcast %3 : vector<1x128xf32> to vector<64x128xf32>
    %5 = arith.addf %2, %4 : vector<64x128xf32>
    %c0_5 = arith.constant 0 : index
    %c0_6 = arith.constant 0 : index
    %6 = vector.load %arg6[%c0_5, %c0_6] : memref<16x64xf32, #tpu.memory_space<vmem>>, vector<16x64xf32>
    %c0_7 = arith.constant 0 : index
    %c0_8 = arith.constant 0 : index
    %7 = vector.load %arg7[%c0_7, %c0_8] : memref<16x64xf32, #tpu.memory_space<vmem>>, vector<16x64xf32>
    %8 = vector.extract_strided_slice %5 {offsets = [56, 64], sizes = [8, 64], strides = [1, 1]} : vector<64x128xf32> to vector<8x64xf32>
    %c0_9 = arith.constant 0 : index
    %c0_10 = arith.constant 0 : index
    %9 = vector.load %arg3[%c0_9, %c0_10] : memref<8x16xf32, #tpu.memory_space<vmem>>, vector<8x16xf32>
    %c0_11 = arith.constant 0 : index
    %c0_12 = arith.constant 0 : index
    %10 = vector.load %arg4[%c0_11, %c0_12] : memref<8x16xf32, #tpu.memory_space<vmem>>, vector<8x16xf32>
    %cst_13 = arith.constant dense<0.000000e+00> : vector<8x64xf32>
    %11 = tpu.matmul %9, %7, %cst_13 {dimension_numbers = #tpu.dot_dimension_numbers<[1], [0], [0], [1], [0, 0, 1, 1], [], []>} : vector<8x16xf32>, vector<16x64xf32>, vector<8x64xf32> -> vector<8x64xf32>
    %12 = arith.addf %8, %11 : vector<8x64xf32>
    %13 = vector.extract_strided_slice %12 {offsets = [0, 0], sizes = [8, 48], strides = [1, 1]} : vector<8x64xf32> to vector<8x48xf32>
    %14 = arith.negf %13 : vector<8x48xf32>
    %15 = math.exp %14 : vector<8x48xf32>
    %cst_14 = arith.constant 1.000000e+00 : f32
    %16 = vector.broadcast %cst_14 : f32 to vector<8x48xf32>
    %17 = arith.addf %16, %15 : vector<8x48xf32>
    %18 = arith.divf %16, %17 : vector<8x48xf32>
    %19 = vector.extract_strided_slice %12 {offsets = [0, 48], sizes = [8, 16], strides = [1, 1]} : vector<8x64xf32> to vector<8x16xf32>
    %20 = math.tanh %19 : vector<8x16xf32>
    %21 = vector.extract_strided_slice %18 {offsets = [0, 16], sizes = [8, 16], strides = [1, 1]} : vector<8x48xf32> to vector<8x16xf32>
    %22 = arith.mulf %21, %10 : vector<8x16xf32>
    %23 = vector.extract_strided_slice %18 {offsets = [0, 0], sizes = [8, 16], strides = [1, 1]} : vector<8x48xf32> to vector<8x16xf32>
    %24 = arith.mulf %23, %20 : vector<8x16xf32>
    %25 = arith.addf %22, %24 : vector<8x16xf32>
    %26 = vector.extract_strided_slice %18 {offsets = [0, 32], sizes = [8, 16], strides = [1, 1]} : vector<8x48xf32> to vector<8x16xf32>
    %27 = math.tanh %25 : vector<8x16xf32>
    %28 = arith.mulf %26, %27 : vector<8x16xf32>
    %c0_15 = arith.constant 0 : index
    %c0_16 = arith.constant 0 : index
    %29 = vector.load %arg1[%c0_15, %c0_16] : memref<8x16xf32, #tpu.memory_space<vmem>>, vector<8x16xf32>
    %c0_17 = arith.constant 0 : index
    %c0_18 = arith.constant 0 : index
    %30 = vector.load %arg2[%c0_17, %c0_18] : memref<8x16xf32, #tpu.memory_space<vmem>>, vector<8x16xf32>
    %31 = vector.extract_strided_slice %5 {offsets = [0, 0], sizes = [8, 64], strides = [1, 1]} : vector<64x128xf32> to vector<8x64xf32>
    %cst_19 = arith.constant dense<0.000000e+00> : vector<8x64xf32>
    %32 = tpu.matmul %29, %6, %cst_19 {dimension_numbers = #tpu.dot_dimension_numbers<[1], [0], [0], [1], [0, 0, 1, 1], [], []>} : vector<8x16xf32>, vector<16x64xf32>, vector<8x64xf32> -> vector<8x64xf32>
    %33 = arith.addf %31, %32 : vector<8x64xf32>
    %34 = vector.extract_strided_slice %33 {offsets = [0, 0], sizes = [8, 48], strides = [1, 1]} : vector<8x64xf32> to vector<8x48xf32>
    %35 = arith.negf %34 : vector<8x48xf32>
    %36 = math.exp %35 : vector<8x48xf32>
    %cst_20 = arith.constant 1.000000e+00 : f32
    %37 = vector.broadcast %cst_20 : f32 to vector<8x48xf32>
    %38 = arith.addf %37, %36 : vector<8x48xf32>
    %39 = arith.divf %37, %38 : vector<8x48xf32>
    %40 = vector.extract_strided_slice %33 {offsets = [0, 48], sizes = [8, 16], strides = [1, 1]} : vector<8x64xf32> to vector<8x16xf32>
    %41 = math.tanh %40 : vector<8x16xf32>
    %42 = vector.extract_strided_slice %39 {offsets = [0, 16], sizes = [8, 16], strides = [1, 1]} : vector<8x48xf32> to vector<8x16xf32>
    %43 = arith.mulf %42, %30 : vector<8x16xf32>
    %44 = vector.extract_strided_slice %39 {offsets = [0, 0], sizes = [8, 16], strides = [1, 1]} : vector<8x48xf32> to vector<8x16xf32>
    %45 = arith.mulf %44, %41 : vector<8x16xf32>
    %46 = arith.addf %43, %45 : vector<8x16xf32>
    %47 = vector.extract_strided_slice %39 {offsets = [0, 32], sizes = [8, 16], strides = [1, 1]} : vector<8x48xf32> to vector<8x16xf32>
    %48 = math.tanh %46 : vector<8x16xf32>
    %49 = arith.mulf %47, %48 : vector<8x16xf32>
    %50 = vector.extract_strided_slice %5 {offsets = [8, 0], sizes = [8, 64], strides = [1, 1]} : vector<64x128xf32> to vector<8x64xf32>
    %cst_21 = arith.constant dense<0.000000e+00> : vector<8x64xf32>
    %51 = tpu.matmul %49, %6, %cst_21 {dimension_numbers = #tpu.dot_dimension_numbers<[1], [0], [0], [1], [0, 0, 1, 1], [], []>} : vector<8x16xf32>, vector<16x64xf32>, vector<8x64xf32> -> vector<8x64xf32>
    %52 = arith.addf %50, %51 : vector<8x64xf32>
    %53 = vector.extract_strided_slice %52 {offsets = [0, 0], sizes = [8, 48], strides = [1, 1]} : vector<8x64xf32> to vector<8x48xf32>
    %54 = arith.negf %53 : vector<8x48xf32>
    %55 = math.exp %54 : vector<8x48xf32>
    %cst_22 = arith.constant 1.000000e+00 : f32
    %56 = vector.broadcast %cst_22 : f32 to vector<8x48xf32>
    %57 = arith.addf %56, %55 : vector<8x48xf32>
    %58 = arith.divf %56, %57 : vector<8x48xf32>
    %59 = vector.extract_strided_slice %52 {offsets = [0, 48], sizes = [8, 16], strides = [1, 1]} : vector<8x64xf32> to vector<8x16xf32>
    %60 = math.tanh %59 : vector<8x16xf32>
    %61 = vector.extract_strided_slice %58 {offsets = [0, 16], sizes = [8, 16], strides = [1, 1]} : vector<8x48xf32> to vector<8x16xf32>
    %62 = arith.mulf %61, %46 : vector<8x16xf32>
    %63 = vector.extract_strided_slice %58 {offsets = [0, 0], sizes = [8, 16], strides = [1, 1]} : vector<8x48xf32> to vector<8x16xf32>
    %64 = arith.mulf %63, %60 : vector<8x16xf32>
    %65 = arith.addf %62, %64 : vector<8x16xf32>
    %66 = vector.extract_strided_slice %58 {offsets = [0, 32], sizes = [8, 16], strides = [1, 1]} : vector<8x48xf32> to vector<8x16xf32>
    %67 = math.tanh %65 : vector<8x16xf32>
    %68 = arith.mulf %66, %67 : vector<8x16xf32>
    %69 = vector.extract_strided_slice %5 {offsets = [16, 0], sizes = [8, 64], strides = [1, 1]} : vector<64x128xf32> to vector<8x64xf32>
    %cst_23 = arith.constant dense<0.000000e+00> : vector<8x64xf32>
    %70 = tpu.matmul %68, %6, %cst_23 {dimension_numbers = #tpu.dot_dimension_numbers<[1], [0], [0], [1], [0, 0, 1, 1], [], []>} : vector<8x16xf32>, vector<16x64xf32>, vector<8x64xf32> -> vector<8x64xf32>
    %71 = arith.addf %69, %70 : vector<8x64xf32>
    %72 = vector.extract_strided_slice %71 {offsets = [0, 0], sizes = [8, 48], strides = [1, 1]} : vector<8x64xf32> to vector<8x48xf32>
    %73 = arith.negf %72 : vector<8x48xf32>
    %74 = math.exp %73 : vector<8x48xf32>
    %cst_24 = arith.constant 1.000000e+00 : f32
    %75 = vector.broadcast %cst_24 : f32 to vector<8x48xf32>
    %76 = arith.addf %75, %74 : vector<8x48xf32>
    %77 = arith.divf %75, %76 : vector<8x48xf32>
    %78 = vector.extract_strided_slice %71 {offsets = [0, 48], sizes = [8, 16], strides = [1, 1]} : vector<8x64xf32> to vector<8x16xf32>
    %79 = math.tanh %78 : vector<8x16xf32>
    %80 = vector.extract_strided_slice %77 {offsets = [0, 16], sizes = [8, 16], strides = [1, 1]} : vector<8x48xf32> to vector<8x16xf32>
    %81 = arith.mulf %80, %65 : vector<8x16xf32>
    %82 = vector.extract_strided_slice %77 {offsets = [0, 0], sizes = [8, 16], strides = [1, 1]} : vector<8x48xf32> to vector<8x16xf32>
    %83 = arith.mulf %82, %79 : vector<8x16xf32>
    %84 = arith.addf %81, %83 : vector<8x16xf32>
    %85 = vector.extract_strided_slice %77 {offsets = [0, 32], sizes = [8, 16], strides = [1, 1]} : vector<8x48xf32> to vector<8x16xf32>
    %86 = math.tanh %84 : vector<8x16xf32>
    %87 = arith.mulf %85, %86 : vector<8x16xf32>
    %88 = vector.extract_strided_slice %5 {offsets = [24, 0], sizes = [8, 64], strides = [1, 1]} : vector<64x128xf32> to vector<8x64xf32>
    %cst_25 = arith.constant dense<0.000000e+00> : vector<8x64xf32>
    %89 = tpu.matmul %87, %6, %cst_25 {dimension_numbers = #tpu.dot_dimension_numbers<[1], [0], [0], [1], [0, 0, 1, 1], [], []>} : vector<8x16xf32>, vector<16x64xf32>, vector<8x64xf32> -> vector<8x64xf32>
    %90 = arith.addf %88, %89 : vector<8x64xf32>
    %91 = vector.extract_strided_slice %90 {offsets = [0, 0], sizes = [8, 48], strides = [1, 1]} : vector<8x64xf32> to vector<8x48xf32>
    %92 = arith.negf %91 : vector<8x48xf32>
    %93 = math.exp %92 : vector<8x48xf32>
    %cst_26 = arith.constant 1.000000e+00 : f32
    %94 = vector.broadcast %cst_26 : f32 to vector<8x48xf32>
    %95 = arith.addf %94, %93 : vector<8x48xf32>
    %96 = arith.divf %94, %95 : vector<8x48xf32>
    %97 = vector.extract_strided_slice %90 {offsets = [0, 48], sizes = [8, 16], strides = [1, 1]} : vector<8x64xf32> to vector<8x16xf32>
    %98 = math.tanh %97 : vector<8x16xf32>
    %99 = vector.extract_strided_slice %96 {offsets = [0, 16], sizes = [8, 16], strides = [1, 1]} : vector<8x48xf32> to vector<8x16xf32>
    %100 = arith.mulf %99, %84 : vector<8x16xf32>
    %101 = vector.extract_strided_slice %96 {offsets = [0, 0], sizes = [8, 16], strides = [1, 1]} : vector<8x48xf32> to vector<8x16xf32>
    %102 = arith.mulf %101, %98 : vector<8x16xf32>
    %103 = arith.addf %100, %102 : vector<8x16xf32>
    %104 = vector.extract_strided_slice %96 {offsets = [0, 32], sizes = [8, 16], strides = [1, 1]} : vector<8x48xf32> to vector<8x16xf32>
    %105 = math.tanh %103 : vector<8x16xf32>
    %106 = arith.mulf %104, %105 : vector<8x16xf32>
    %107 = vector.extract_strided_slice %5 {offsets = [32, 0], sizes = [8, 64], strides = [1, 1]} : vector<64x128xf32> to vector<8x64xf32>
    %cst_27 = arith.constant dense<0.000000e+00> : vector<8x64xf32>
    %108 = tpu.matmul %106, %6, %cst_27 {dimension_numbers = #tpu.dot_dimension_numbers<[1], [0], [0], [1], [0, 0, 1, 1], [], []>} : vector<8x16xf32>, vector<16x64xf32>, vector<8x64xf32> -> vector<8x64xf32>
    %109 = arith.addf %107, %108 : vector<8x64xf32>
    %110 = vector.extract_strided_slice %109 {offsets = [0, 0], sizes = [8, 48], strides = [1, 1]} : vector<8x64xf32> to vector<8x48xf32>
    %111 = arith.negf %110 : vector<8x48xf32>
    %112 = math.exp %111 : vector<8x48xf32>
    %cst_28 = arith.constant 1.000000e+00 : f32
    %113 = vector.broadcast %cst_28 : f32 to vector<8x48xf32>
    %114 = arith.addf %113, %112 : vector<8x48xf32>
    %115 = arith.divf %113, %114 : vector<8x48xf32>
    %116 = vector.extract_strided_slice %109 {offsets = [0, 48], sizes = [8, 16], strides = [1, 1]} : vector<8x64xf32> to vector<8x16xf32>
    %117 = math.tanh %116 : vector<8x16xf32>
    %118 = vector.extract_strided_slice %115 {offsets = [0, 16], sizes = [8, 16], strides = [1, 1]} : vector<8x48xf32> to vector<8x16xf32>
    %119 = arith.mulf %118, %103 : vector<8x16xf32>
    %120 = vector.extract_strided_slice %115 {offsets = [0, 0], sizes = [8, 16], strides = [1, 1]} : vector<8x48xf32> to vector<8x16xf32>
    %121 = arith.mulf %120, %117 : vector<8x16xf32>
    %122 = arith.addf %119, %121 : vector<8x16xf32>
    %123 = vector.extract_strided_slice %115 {offsets = [0, 32], sizes = [8, 16], strides = [1, 1]} : vector<8x48xf32> to vector<8x16xf32>
    %124 = math.tanh %122 : vector<8x16xf32>
    %125 = arith.mulf %123, %124 : vector<8x16xf32>
    %126 = vector.extract_strided_slice %5 {offsets = [40, 0], sizes = [8, 64], strides = [1, 1]} : vector<64x128xf32> to vector<8x64xf32>
    %cst_29 = arith.constant dense<0.000000e+00> : vector<8x64xf32>
    %127 = tpu.matmul %125, %6, %cst_29 {dimension_numbers = #tpu.dot_dimension_numbers<[1], [0], [0], [1], [0, 0, 1, 1], [], []>} : vector<8x16xf32>, vector<16x64xf32>, vector<8x64xf32> -> vector<8x64xf32>
    %128 = arith.addf %126, %127 : vector<8x64xf32>
    %129 = vector.extract_strided_slice %128 {offsets = [0, 0], sizes = [8, 48], strides = [1, 1]} : vector<8x64xf32> to vector<8x48xf32>
    %130 = arith.negf %129 : vector<8x48xf32>
    %131 = math.exp %130 : vector<8x48xf32>
    %cst_30 = arith.constant 1.000000e+00 : f32
    %132 = vector.broadcast %cst_30 : f32 to vector<8x48xf32>
    %133 = arith.addf %132, %131 : vector<8x48xf32>
    %134 = arith.divf %132, %133 : vector<8x48xf32>
    %135 = vector.extract_strided_slice %128 {offsets = [0, 48], sizes = [8, 16], strides = [1, 1]} : vector<8x64xf32> to vector<8x16xf32>
    %136 = math.tanh %135 : vector<8x16xf32>
    %137 = vector.extract_strided_slice %134 {offsets = [0, 16], sizes = [8, 16], strides = [1, 1]} : vector<8x48xf32> to vector<8x16xf32>
    %138 = arith.mulf %137, %122 : vector<8x16xf32>
    %139 = vector.extract_strided_slice %134 {offsets = [0, 0], sizes = [8, 16], strides = [1, 1]} : vector<8x48xf32> to vector<8x16xf32>
    %140 = arith.mulf %139, %136 : vector<8x16xf32>
    %141 = arith.addf %138, %140 : vector<8x16xf32>
    %142 = vector.extract_strided_slice %134 {offsets = [0, 32], sizes = [8, 16], strides = [1, 1]} : vector<8x48xf32> to vector<8x16xf32>
    %143 = math.tanh %141 : vector<8x16xf32>
    %144 = arith.mulf %142, %143 : vector<8x16xf32>
    %145 = vector.extract_strided_slice %5 {offsets = [48, 0], sizes = [8, 64], strides = [1, 1]} : vector<64x128xf32> to vector<8x64xf32>
    %cst_31 = arith.constant dense<0.000000e+00> : vector<8x64xf32>
    %146 = tpu.matmul %144, %6, %cst_31 {dimension_numbers = #tpu.dot_dimension_numbers<[1], [0], [0], [1], [0, 0, 1, 1], [], []>} : vector<8x16xf32>, vector<16x64xf32>, vector<8x64xf32> -> vector<8x64xf32>
    %147 = arith.addf %145, %146 : vector<8x64xf32>
    %148 = vector.extract_strided_slice %147 {offsets = [0, 0], sizes = [8, 48], strides = [1, 1]} : vector<8x64xf32> to vector<8x48xf32>
    %149 = arith.negf %148 : vector<8x48xf32>
    %150 = math.exp %149 : vector<8x48xf32>
    %cst_32 = arith.constant 1.000000e+00 : f32
    %151 = vector.broadcast %cst_32 : f32 to vector<8x48xf32>
    %152 = arith.addf %151, %150 : vector<8x48xf32>
    %153 = arith.divf %151, %152 : vector<8x48xf32>
    %154 = vector.extract_strided_slice %147 {offsets = [0, 48], sizes = [8, 16], strides = [1, 1]} : vector<8x64xf32> to vector<8x16xf32>
    %155 = math.tanh %154 : vector<8x16xf32>
    %156 = vector.extract_strided_slice %153 {offsets = [0, 16], sizes = [8, 16], strides = [1, 1]} : vector<8x48xf32> to vector<8x16xf32>
    %157 = arith.mulf %156, %141 : vector<8x16xf32>
    %158 = vector.extract_strided_slice %153 {offsets = [0, 0], sizes = [8, 16], strides = [1, 1]} : vector<8x48xf32> to vector<8x16xf32>
    %159 = arith.mulf %158, %155 : vector<8x16xf32>
    %160 = arith.addf %157, %159 : vector<8x16xf32>
    %161 = vector.extract_strided_slice %153 {offsets = [0, 32], sizes = [8, 16], strides = [1, 1]} : vector<8x48xf32> to vector<8x16xf32>
    %162 = math.tanh %160 : vector<8x16xf32>
    %163 = arith.mulf %161, %162 : vector<8x16xf32>
    %164 = vector.extract_strided_slice %5 {offsets = [56, 0], sizes = [8, 64], strides = [1, 1]} : vector<64x128xf32> to vector<8x64xf32>
    %cst_33 = arith.constant dense<0.000000e+00> : vector<8x64xf32>
    %165 = tpu.matmul %163, %6, %cst_33 {dimension_numbers = #tpu.dot_dimension_numbers<[1], [0], [0], [1], [0, 0, 1, 1], [], []>} : vector<8x16xf32>, vector<16x64xf32>, vector<8x64xf32> -> vector<8x64xf32>
    %166 = arith.addf %164, %165 : vector<8x64xf32>
    %167 = vector.extract_strided_slice %166 {offsets = [0, 0], sizes = [8, 48], strides = [1, 1]} : vector<8x64xf32> to vector<8x48xf32>
    %168 = arith.negf %167 : vector<8x48xf32>
    %169 = math.exp %168 : vector<8x48xf32>
    %cst_34 = arith.constant 1.000000e+00 : f32
    %170 = vector.broadcast %cst_34 : f32 to vector<8x48xf32>
    %171 = arith.addf %170, %169 : vector<8x48xf32>
    %172 = arith.divf %170, %171 : vector<8x48xf32>
    %173 = vector.extract_strided_slice %166 {offsets = [0, 48], sizes = [8, 16], strides = [1, 1]} : vector<8x64xf32> to vector<8x16xf32>
    %174 = math.tanh %173 : vector<8x16xf32>
    %175 = vector.extract_strided_slice %172 {offsets = [0, 16], sizes = [8, 16], strides = [1, 1]} : vector<8x48xf32> to vector<8x16xf32>
    %176 = arith.mulf %175, %160 : vector<8x16xf32>
    %177 = vector.extract_strided_slice %172 {offsets = [0, 0], sizes = [8, 16], strides = [1, 1]} : vector<8x48xf32> to vector<8x16xf32>
    %178 = arith.mulf %177, %174 : vector<8x16xf32>
    %179 = arith.addf %176, %178 : vector<8x16xf32>
    %180 = vector.extract_strided_slice %172 {offsets = [0, 32], sizes = [8, 16], strides = [1, 1]} : vector<8x48xf32> to vector<8x16xf32>
    %181 = math.tanh %179 : vector<8x16xf32>
    %182 = arith.mulf %180, %181 : vector<8x16xf32>
    %183 = tpu.concatenate %182, %28 in 1 : vector<8x16xf32>, vector<8x16xf32> -> vector<8x32xf32>
    %c0_35 = arith.constant 0 : index
    %c0_36 = arith.constant 0 : index
    %184 = vector.load %arg9[%c0_35, %c0_36] : memref<8x32xf32, #tpu.memory_space<vmem>>, vector<8x32xf32>
    tpu.vector_store %arg9[%c0_35, %c0_36], %183 {strides = array<i32>} : memref<8x32xf32, #tpu.memory_space<vmem>>, vector<8x32xf32>,
    return
  }
}

</mosaic_0001>

<llo_original>
// kernel: tpu_custom_call.1
$region0: #{tpu_custom_call.1}
  #allocation0 [shape = 'u32[]', space=smem, size = 0x4, offset = 0x4, fixed_abs, tag = 'smem constant byte address 0x4 - core index']
  #allocation1 [shape = 'u32[144,128]{1,0:T(1,128)}', space=vmem, size = 0x12000, scoped, tag = 'internal scratch']
  %s0 = inlined_call_operand.vmem [shape: f32[64,8], index: 0, kind: input, shape index: {}]
  %s1 = inlined_call_operand.vmem [shape: f32[8,16], index: 1, kind: input, shape index: {}]
  %s2 = inlined_call_operand.vmem [shape: f32[8,16], index: 2, kind: input, shape index: {}]
  %s3 = inlined_call_operand.vmem [shape: f32[8,16], index: 3, kind: input, shape index: {}]
  %s4 = inlined_call_operand.vmem [shape: f32[8,16], index: 4, kind: input, shape index: {}]
  %s5 = inlined_call_operand.vmem [shape: f32[8,128], index: 5, kind: input, shape index: {}]
  %s6 = inlined_call_operand.vmem [shape: f32[16,64], index: 6, kind: input, shape index: {}]
  %s7 = inlined_call_operand.vmem [shape: f32[16,64], index: 7, kind: input, shape index: {}]
  %s8 = inlined_call_operand.vmem [shape: f32[1,128], index: 8, kind: input, shape index: {}]
  %s9 = inlined_call_operand.hbm [shape: f32[8,32], index: 9, kind: output, shape index: {}]
  %s10 = sld [smem:[#allocation0]]
  $region46: #{tpu_custom_call.1} parent=0
    _
  %s12 = ssub.s32 1, %s10
  %s13 = scalar_select 0, %s12, %s10
  $region1: #{tpu_custom_call.1} parent=0
    #allocation2 [shape = 'u8[4096]{0}', space=vmem, size = 0x1000, scoped, tag = 'output window, operand 0, single buffered']
    #allocation3 [shape = 's32[1]{0}', space=sflag, size = 0x4, scoped, tag = 'scoped memory for tpu_custom_call.1']
    %14 = vsyncpa [#allocation3], 0
    // Predicated region
    $region2: #{tpu_custom_call.1} parent=1 // pred_check
      _
    $region3: #{tpu_custom_call.1} parent=1 // pred_check_branch
      %16 = sbr.rel (0) target = $region5
    $region4: #{tpu_custom_call.1} parent=1 // pred_region
      _
    $region5: #{tpu_custom_call.1} parent=1 // pred_fallthru
      _
    // Predicated region
    $region6: #{tpu_custom_call.1} parent=1 // pred_check
      _
    $region7: #{tpu_custom_call.1} parent=1 // pred_check_branch
      %18 = sbr.rel (0) target = $region9
    $region8: #{tpu_custom_call.1} parent=1 // pred_region
      _
    $region9: #{tpu_custom_call.1} parent=1 // pred_fallthru
      _
    // Predicated region
    $region10: #{tpu_custom_call.1} parent=1 // pred_check
      _
    $region11: #{tpu_custom_call.1} parent=1 // pred_check_branch
      %20 = sbr.rel (0) target = $region13
    $region12: #{tpu_custom_call.1} parent=1 // pred_region
      _
    $region13: #{tpu_custom_call.1} parent=1 // pred_fallthru
      _
    // Predicated region
    $region14: #{tpu_custom_call.1} parent=1 // pred_check
      _
    $region15: #{tpu_custom_call.1} parent=1 // pred_check_branch
      %22 = sbr.rel (0) target = $region17
    $region16: #{tpu_custom_call.1} parent=1 // pred_region
      _
    $region17: #{tpu_custom_call.1} parent=1 // pred_fallthru
      _
    // Predicated region
    $region18: #{tpu_custom_call.1} parent=1 // pred_check
      _
    $region19: #{tpu_custom_call.1} parent=1 // pred_check_branch
      %24 = sbr.rel (0) target = $region21
    $region20: #{tpu_custom_call.1} parent=1 // pred_region
      _
    $region21: #{tpu_custom_call.1} parent=1 // pred_fallthru
      _
    // Predicated region
    $region22: #{tpu_custom_call.1} parent=1 // pred_check
      _
    $region23: #{tpu_custom_call.1} parent=1 // pred_check_branch
      %26 = sbr.rel (0) target = $region25
    $region24: #{tpu_custom_call.1} parent=1 // pred_region
      _
    $region25: #{tpu_custom_call.1} parent=1 // pred_fallthru
      _
    // Predicated region
    $region26: #{tpu_custom_call.1} parent=1 // pred_check
      _
    $region27: #{tpu_custom_call.1} parent=1 // pred_check_branch
      %28 = sbr.rel (0) target = $region29
    $region28: #{tpu_custom_call.1} parent=1 // pred_region
      _
    $region29: #{tpu_custom_call.1} parent=1 // pred_fallthru
      _
    // Predicated region
    $region30: #{tpu_custom_call.1} parent=1 // pred_check
      _
    $region31: #{tpu_custom_call.1} parent=1 // pred_check_branch
      %30 = sbr.rel (0) target = $region33
    $region32: #{tpu_custom_call.1} parent=1 // pred_region
      _
    $region33: #{tpu_custom_call.1} parent=1 // pred_fallthru
      _
    // Predicated region
    $region34: #{tpu_custom_call.1} parent=1 // pred_check
      _
    $region35: #{tpu_custom_call.1} parent=1 // pred_check_branch
      %32 = sbr.rel (0) target = $region37
    $region36: #{tpu_custom_call.1} parent=1 // pred_region
      _
    $region37: #{tpu_custom_call.1} parent=1 // pred_fallthru
      _
    %v33 = vld [vmem:[%s0] sm:$0xff]
    %v34 = vld [vmem:[%s0 + $0x8] sm:$0xff]
    %v35 = vld [vmem:[%s0 + $0x10] sm:$0xff]
    %v36 = vld [vmem:[%s0 + $0x18] sm:$0xff]
    %v37 = vld [vmem:[%s0 + $0x20] sm:$0xff]
    %v38 = vld [vmem:[%s0 + $0x28] sm:$0xff]
    %v39 = vld [vmem:[%s0 + $0x30] sm:$0xff]
    %v40 = vld [vmem:[%s0 + $0x38] sm:$0xff]
    %v41 = vld [vmem:[%s5] sm:$0xff]
    %v42 = vld [vmem:[%s8] sm:$0x1]
    %v44 = vlaneseq
    %v45 = vshrl.u32 %v44, 7
    %v46 = vsub.s32 0, %v45
    %v47 = vrot.slane %v42, %v46
    %vm49 = vcmask 64512
    %v51 = vsel %vm49, %v33, 0
    %v54 = vsel %vm49, %v34, 0
    %v57 = vsel %vm49, %v35, 0
    %v60 = vsel %vm49, %v36, 0
    %v63 = vsel %vm49, %v37, 0
    %v66 = vsel %vm49, %v38, 0
    %v69 = vsel %vm49, %v39, 0
    %v72 = vsel %vm49, %v40, 0
    %74 = vmatprep.subr.mxu0 0.0
    %75 = vmatpush1.msra.mxu0 0.0
    %76 = vmatprep.subr.mxu0 0.0
    %77 = vmatpush1.msra.mxu0 0.0
    %78 = vmatprep.subr.mxu0 0.0
    %79 = vmatpush1.msra.mxu0 0.0
    %80 = vmatprep.subr.mxu0 0.0
    %81 = vmatpush1.msra.mxu0 0.0
    %82 = vmatprep.subr.mxu0 0.0
    %83 = vmatpush1.msra.mxu0 0.0
    %84 = vmatprep.subr.mxu0 0.0
    %85 = vmatpush1.msra.mxu0 0.0
    %86 = vmatprep.subr.mxu0 0.0
    %87 = vmatpush1.msra.mxu0 0.0
    %88 = vmatprep.subr.mxu0 0.0
    %89 = vmatpush1.msra.mxu0 0.0
    %90 = vmatprep.subr.mxu0 0.0
    %91 = vmatpush1.msra.mxu0 0.0
    %92 = vmatprep.subr.mxu0 0.0
    %93 = vmatpush1.msra.mxu0 0.0
    %94 = vmatprep.subr.mxu0 0.0
    %95 = vmatpush1.msra.mxu0 0.0
    %96 = vmatprep.subr.mxu0 0.0
    %97 = vmatpush1.msra.mxu0 0.0
    %98 = vmatprep.subr.mxu0 0.0
    %99 = vmatpush1.msra.mxu0 0.0
    %100 = vmatprep.subr.mxu0 0.0
    %101 = vmatpush1.msra.mxu0 0.0
    %102 = vmatprep.subr.mxu0 0.0
    %103 = vmatpush1.msra.mxu0 0.0
    %104 = vmatprep.subr.mxu0 0.0
    %105 = vmatpush1.msra.mxu0 %v41
    %106 = vmatprep.subr.mxu0 0.0
    %107 = vmatpush2.msra.mxu0 0.0
    %108 = vmatprep.subr.mxu0 0.0
    %109 = vmatpush2.msra.mxu0 0.0
    %110 = vmatprep.subr.mxu0 0.0
    %111 = vmatpush2.msra.mxu0 0.0
    %112 = vmatprep.subr.mxu0 0.0
    %113 = vmatpush2.msra.mxu0 0.0
    %114 = vmatprep.subr.mxu0 0.0
    %115 = vmatpush2.msra.mxu0 0.0
    %116 = vmatprep.subr.mxu0 0.0
    %117 = vmatpush2.msra.mxu0 0.0
    %118 = vmatprep.subr.mxu0 0.0
    %119 = vmatpush2.msra.mxu0 0.0
    %120 = vmatprep.subr.mxu0 0.0
    %121 = vmatpush2.msra.mxu0 0.0
    %122 = vmatprep.subr.mxu0 0.0
    %123 = vmatpush2.msra.mxu0 0.0
    %124 = vmatprep.subr.mxu0 0.0
    %125 = vmatpush2.msra.mxu0 0.0
    %126 = vmatprep.subr.mxu0 0.0
    %127 = vmatpush2.msra.mxu0 0.0
    %128 = vmatprep.subr.mxu0 0.0
    %129 = vmatpush2.msra.mxu0 0.0
    %130 = vmatprep.subr.mxu0 0.0
    %131 = vmatpush2.msra.mxu0 0.0
    %132 = vmatprep.subr.mxu0 0.0
    %133 = vmatpush2.msra.mxu0 0.0
    %134 = vmatprep.subr.mxu0 0.0
    %135 = vmatpush2.msra.mxu0 0.0
    %136 = vmatprep.subr.mxu0 0.0
    %137 = vmatpush2.msra.mxu0 0.0
    %138 = vmatprep.mubr.f32.mxu0 0.0
    %139 = vmatmul.mubr.f32.gmra.mxu0 %v51
    %v140 = vpop.f32.mrf.mxu0
    %v141 = vadd.f32 %v47, %v140
    %v142 = vpop.f32.mrf.mxu0
    %143 = vmatprep.mubr.f32.mxu0 0.0
    %144 = vmatmul.mubr.f32.gmra.mxu0 %v54
    %v145 = vpop.f32.mrf.mxu0
    %v146 = vadd.f32 %v47, %v145
    %v147 = vpop.f32.mrf.mxu0
    %148 = vmatprep.mubr.f32.mxu0 0.0
    %149 = vmatmul.mubr.f32.gmra.mxu0 %v57
    %v150 = vpop.f32.mrf.mxu0
    %v151 = vadd.f32 %v47, %v150
    %v152 = vpop.f32.mrf.mxu0
    %153 = vmatprep.mubr.f32.mxu0 0.0
    %154 = vmatmul.mubr.f32.gmra.mxu0 %v60
    %v155 = vpop.f32.mrf.mxu0
    %v156 = vadd.f32 %v47, %v155
    %v157 = vpop.f32.mrf.mxu0
    %158 = vmatprep.mubr.f32.mxu0 0.0
    %159 = vmatmul.mubr.f32.gmra.mxu0 %v63
    %v160 = vpop.f32.mrf.mxu0
    %v161 = vadd.f32 %v47, %v160
    %v162 = vpop.f32.mrf.mxu0
    %163 = vmatprep.mubr.f32.mxu0 0.0
    %164 = vmatmul.mubr.f32.gmra.mxu0 %v66
    %v165 = vpop.f32.mrf.mxu0
    %v166 = vadd.f32 %v47, %v165
    %v167 = vpop.f32.mrf.mxu0
    %168 = vmatprep.mubr.f32.mxu0 0.0
    %169 = vmatmul.mubr.f32.gmra.mxu0 %v69
    %v170 = vpop.f32.mrf.mxu0
    %v171 = vadd.f32 %v47, %v170
    %v172 = vpop.f32.mrf.mxu0
    %173 = vmatprep.mubr.f32.mxu0 0.0
    %174 = vmatmul.mubr.f32.gmra.mxu0 %v72
    %v175 = vpop.f32.mrf.mxu0
    %v176 = vadd.f32 %v47, %v175
    %v177 = vpop.f32.mrf.mxu0
    %178 = vdwg.mxu0
    %v179 = vld [vmem:[%s6] sm:$0xff]
    %v180 = vld [vmem:[%s6 + $0x8] sm:$0xff]
    %v181 = vld [vmem:[%s7] sm:$0xff]
    %v182 = vld [vmem:[%s7 + $0x8] sm:$0xff]
    %v183 = vld [vmem:[%s3] sm:$0xff]
    %v184 = vld [vmem:[%s4] sm:$0xff]
    %vm185 = vcmask 130048
    %v187 = vsel %vm185, %v183, 0
    %189 = vmatprep.subr.mxu0 0.0
    %190 = vmatpush1.msra.mxu0 0.0
    %191 = vmatprep.subr.mxu0 0.0
    %192 = vmatpush1.msra.mxu0 0.0
    %193 = vmatprep.subr.mxu0 0.0
    %194 = vmatpush1.msra.mxu0 0.0
    %195 = vmatprep.subr.mxu0 0.0
    %196 = vmatpush1.msra.mxu0 0.0
    %197 = vmatprep.subr.mxu0 0.0
    %198 = vmatpush1.msra.mxu0 0.0
    %199 = vmatprep.subr.mxu0 0.0
    %200 = vmatpush1.msra.mxu0 0.0
    %201 = vmatprep.subr.mxu0 0.0
    %202 = vmatpush1.msra.mxu0 0.0
    %203 = vmatprep.subr.mxu0 0.0
    %204 = vmatpush1.msra.mxu0 0.0
    %205 = vmatprep.subr.mxu0 0.0
    %206 = vmatpush1.msra.mxu0 0.0
    %207 = vmatprep.subr.mxu0 0.0
    %208 = vmatpush1.msra.mxu0 0.0
    %209 = vmatprep.subr.mxu0 0.0
    %210 = vmatpush1.msra.mxu0 0.0
    %211 = vmatprep.subr.mxu0 0.0
    %212 = vmatpush1.msra.mxu0 0.0
    %213 = vmatprep.subr.mxu0 0.0
    %214 = vmatpush1.msra.mxu0 0.0
    %215 = vmatprep.subr.mxu0 0.0
    %216 = vmatpush1.msra.mxu0 0.0
    %217 = vmatprep.subr.mxu0 0.0
    %218 = vmatpush1.msra.mxu0 %v182
    %219 = vmatprep.subr.mxu0 0.0
    %220 = vmatpush1.msra.mxu0 %v181
    %221 = vmatprep.subr.mxu0 0.0
    %222 = vmatpush2.msra.mxu0 0.0
    %223 = vmatprep.subr.mxu0 0.0
    %224 = vmatpush2.msra.mxu0 0.0
    %225 = vmatprep.subr.mxu0 0.0
    %226 = vmatpush2.msra.mxu0 0.0
    %227 = vmatprep.subr.mxu0 0.0
    %228 = vmatpush2.msra.mxu0 0.0
    %229 = vmatprep.subr.mxu0 0.0
    %230 = vmatpush2.msra.mxu0 0.0
    %231 = vmatprep.subr.mxu0 0.0
    %232 = vmatpush2.msra.mxu0 0.0
    %233 = vmatprep.subr.mxu0 0.0
    %234 = vmatpush2.msra.mxu0 0.0
    %235 = vmatprep.subr.mxu0 0.0
    %236 = vmatpush2.msra.mxu0 0.0
    %237 = vmatprep.subr.mxu0 0.0
    %238 = vmatpush2.msra.mxu0 0.0
    %239 = vmatprep.subr.mxu0 0.0
    %240 = vmatpush2.msra.mxu0 0.0
    %241 = vmatprep.subr.mxu0 0.0
    %242 = vmatpush2.msra.mxu0 0.0
    %243 = vmatprep.subr.mxu0 0.0
    %244 = vmatpush2.msra.mxu0 0.0
    %245 = vmatprep.subr.mxu0 0.0
    %246 = vmatpush2.msra.mxu0 0.0
    %247 = vmatprep.subr.mxu0 0.0
    %248 = vmatpush2.msra.mxu0 0.0
    %249 = vmatprep.subr.mxu0 0.0
    %250 = vmatpush2.msra.mxu0 0.0
    %251 = vmatprep.subr.mxu0 0.0
    %252 = vmatpush2.msra.mxu0 0.0
    %253 = vmatprep.mubr.f32.mxu0 0.0
    %254 = vmatmul.mubr.f32.gmra.mxu0 %v187
    %v255 = vpop.f32.mrf.mxu0
    %v256 = vadd.f32 0.0, %v255
    %v257 = vpop.f32.mrf.mxu0
    %258 = vdwg.mxu0
    %260 = vrot.lane.b32.xlu0 %v256, 64
    %v261 = vpop.permute.xlu0 %260
    %v263 = vadd.f32 %v176, %v261
    %v264 = vxor.u32 %v263, 2147483648
    %v265 = vmul.f32 %v264, 1.442695
    %v266 = vpow.pop %v265
    %v267 = vadd.f32 %v266, 1.0
    %v268 = vrcp.pop %v267
    %v269 = vmul.f32 1.0, %v268
    %v270 = vtanh.pop %v263
    %272 = vrot.lane.b32.xlu0 %v184, 80
    %v273 = vpop.permute.xlu0 %272
    %v275 = vmul.f32 %v269, %v273
    %277 = vrot.lane.b32.xlu0 %v270, 80
    %v278 = vpop.permute.xlu0 %277
    %v280 = vmul.f32 %v269, %v278
    %282 = vrot.lane.b32.xlu0 %v280, 16
    %v283 = vpop.permute.xlu0 %282
    %v285 = vadd.f32 %v275, %v283
    %v286 = vtanh.pop %v285
    %288 = vrot.lane.b32.xlu0 %v286, 16
    %v289 = vpop.permute.xlu0 %288
    %v291 = vmul.f32 %v269, %v289
    %v292 = vld [vmem:[%s1] sm:$0xff]
    %v293 = vld [vmem:[%s2] sm:$0xff]
    %v295 = vsel %vm185, %v292, 0
    %297 = vmatprep.subr.mxu0 0.0
    %298 = vmatpush1.msra.mxu0 0.0
    %299 = vmatprep.subr.mxu0 0.0
    %300 = vmatpush1.msra.mxu0 0.0
    %301 = vmatprep.subr.mxu0 0.0
    %302 = vmatpush1.msra.mxu0 0.0
    %303 = vmatprep.subr.mxu0 0.0
    %304 = vmatpush1.msra.mxu0 0.0
    %305 = vmatprep.subr.mxu0 0.0
    %306 = vmatpush1.msra.mxu0 0.0
    %307 = vmatprep.subr.mxu0 0.0
    %308 = vmatpush1.msra.mxu0 0.0
    %309 = vmatprep.subr.mxu0 0.0
    %310 = vmatpush1.msra.mxu0 0.0
    %311 = vmatprep.subr.mxu0 0.0
    %312 = vmatpush1.msra.mxu0 0.0
    %313 = vmatprep.subr.mxu0 0.0
    %314 = vmatpush1.msra.mxu0 0.0
    %315 = vmatprep.subr.mxu0 0.0
    %316 = vmatpush1.msra.mxu0 0.0
    %317 = vmatprep.subr.mxu0 0.0
    %318 = vmatpush1.msra.mxu0 0.0
    %319 = vmatprep.subr.mxu0 0.0
    %320 = vmatpush1.msra.mxu0 0.0
    %321 = vmatprep.subr.mxu0 0.0
    %322 = vmatpush1.msra.mxu0 0.0
    %323 = vmatprep.subr.mxu0 0.0
    %324 = vmatpush1.msra.mxu0 0.0
    %325 = vmatprep.subr.mxu0 0.0
    %326 = vmatpush1.msra.mxu0 %v180
    %327 = vmatprep.subr.mxu0 0.0
    %328 = vmatpush1.msra.mxu0 %v179
    %329 = vmatprep.subr.mxu0 0.0
    %330 = vmatpush2.msra.mxu0 0.0
    %331 = vmatprep.subr.mxu0 0.0
    %332 = vmatpush2.msra.mxu0 0.0
    %333 = vmatprep.subr.mxu0 0.0
    %334 = vmatpush2.msra.mxu0 0.0
    %335 = vmatprep.subr.mxu0 0.0
    %336 = vmatpush2.msra.mxu0 0.0
    %337 = vmatprep.subr.mxu0 0.0
    %338 = vmatpush2.msra.mxu0 0.0
    %339 = vmatprep.subr.mxu0 0.0
    %340 = vmatpush2.msra.mxu0 0.0
    %341 = vmatprep.subr.mxu0 0.0
    %342 = vmatpush2.msra.mxu0 0.0
    %343 = vmatprep.subr.mxu0 0.0
    %344 = vmatpush2.msra.mxu0 0.0
    %345 = vmatprep.subr.mxu0 0.0
    %346 = vmatpush2.msra.mxu0 0.0
    %347 = vmatprep.subr.mxu0 0.0
    %348 = vmatpush2.msra.mxu0 0.0
    %349 = vmatprep.subr.mxu0 0.0
    %350 = vmatpush2.msra.mxu0 0.0
    %351 = vmatprep.subr.mxu0 0.0
    %352 = vmatpush2.msra.mxu0 0.0
    %353 = vmatprep.subr.mxu0 0.0
    %354 = vmatpush2.msra.mxu0 0.0
    %355 = vmatprep.subr.mxu0 0.0
    %356 = vmatpush2.msra.mxu0 0.0
    %357 = vmatprep.subr.mxu0 0.0
    %358 = vmatpush2.msra.mxu0 0.0
    %359 = vmatprep.subr.mxu0 0.0
    %360 = vmatpush2.msra.mxu0 0.0
    %361 = vmatprep.mubr.f32.mxu0 0.0
    %362 = vmatmul.mubr.f32.gmra.mxu0 %v295
    %v363 = vpop.f32.mrf.mxu0
    %v364 = vadd.f32 0.0, %v363
    %v365 = vpop.f32.mrf.mxu0
    %366 = vdwg.mxu0
    %v367 = vadd.f32 %v141, %v364
    %v368 = vxor.u32 %v367, 2147483648
    %v369 = vmul.f32 %v368, 1.442695
    %v370 = vpow.pop %v369
    %v371 = vadd.f32 %v370, 1.0
    %v372 = vrcp.pop %v371
    %v373 = vmul.f32 1.0, %v372
    %v374 = vtanh.pop %v367
    %376 = vrot.lane.b32.xlu0 %v293, 16
    %v377 = vpop.permute.xlu0 %376
    %v379 = vmul.f32 %v373, %v377
    %381 = vrot.lane.b32.xlu0 %v374, 80
    %v382 = vpop.permute.xlu0 %381
    %v384 = vmul.f32 %v373, %v382
    %386 = vrot.lane.b32.xlu0 %v384, 16
    %v387 = vpop.permute.xlu0 %386
    %v389 = vadd.f32 %v379, %v387
    %v390 = vtanh.pop %v389
    %392 = vrot.lane.b32.xlu0 %v390, 16
    %v393 = vpop.permute.xlu0 %392
    %v395 = vmul.f32 %v373, %v393
    %397 = vrot.lane.b32.xlu0 %v395, 96
    %v398 = vpop.permute.xlu0 %397
    %v399 = vsel %vm185, %v398, 0
    %401 = vmatprep.subr.mxu0 0.0
    %402 = vmatpush1.msra.mxu0 0.0
    %403 = vmatprep.subr.mxu0 0.0
    %404 = vmatpush1.msra.mxu0 0.0
    %405 = vmatprep.subr.mxu0 0.0
    %406 = vmatpush1.msra.mxu0 0.0
    %407 = vmatprep.subr.mxu0 0.0
    %408 = vmatpush1.msra.mxu0 0.0
    %409 = vmatprep.subr.mxu0 0.0
    %410 = vmatpush1.msra.mxu0 0.0
    %411 = vmatprep.subr.mxu0 0.0
    %412 = vmatpush1.msra.mxu0 0.0
    %413 = vmatprep.subr.mxu0 0.0
    %414 = vmatpush1.msra.mxu0 0.0
    %415 = vmatprep.subr.mxu0 0.0
    %416 = vmatpush1.msra.mxu0 0.0
    %417 = vmatprep.subr.mxu0 0.0
    %418 = vmatpush1.msra.mxu0 0.0
    %419 = vmatprep.subr.mxu0 0.0
    %420 = vmatpush1.msra.mxu0 0.0
    %421 = vmatprep.subr.mxu0 0.0
    %422 = vmatpush1.msra.mxu0 0.0
    %423 = vmatprep.subr.mxu0 0.0
    %424 = vmatpush1.msra.mxu0 0.0
    %425 = vmatprep.subr.mxu0 0.0
    %426 = vmatpush1.msra.mxu0 0.0
    %427 = vmatprep.subr.mxu0 0.0
    %428 = vmatpush1.msra.mxu0 0.0
    %429 = vmatprep.subr.mxu0 0.0
    %430 = vmatpush1.msra.mxu0 %v180
    %431 = vmatprep.subr.mxu0 0.0
    %432 = vmatpush1.msra.mxu0 %v179
    %433 = vmatprep.subr.mxu0 0.0
    %434 = vmatpush2.msra.mxu0 0.0
    %435 = vmatprep.subr.mxu0 0.0
    %436 = vmatpush2.msra.mxu0 0.0
    %437 = vmatprep.subr.mxu0 0.0
    %438 = vmatpush2.msra.mxu0 0.0
    %439 = vmatprep.subr.mxu0 0.0
    %440 = vmatpush2.msra.mxu0 0.0
    %441 = vmatprep.subr.mxu0 0.0
    %442 = vmatpush2.msra.mxu0 0.0
    %443 = vmatprep.subr.mxu0 0.0
    %444 = vmatpush2.msra.mxu0 0.0
    %445 = vmatprep.subr.mxu0 0.0
    %446 = vmatpush2.msra.mxu0 0.0
    %447 = vmatprep.subr.mxu0 0.0
    %448 = vmatpush2.msra.mxu0 0.0
    %449 = vmatprep.subr.mxu0 0.0
    %450 = vmatpush2.msra.mxu0 0.0
    %451 = vmatprep.subr.mxu0 0.0
    %452 = vmatpush2.msra.mxu0 0.0
    %453 = vmatprep.subr.mxu0 0.0
    %454 = vmatpush2.msra.mxu0 0.0
    %455 = vmatprep.subr.mxu0 0.0
    %456 = vmatpush2.msra.mxu0 0.0
    %457 = vmatprep.subr.mxu0 0.0
    %458 = vmatpush2.msra.mxu0 0.0
    %459 = vmatprep.subr.mxu0 0.0
    %460 = vmatpush2.msra.mxu0 0.0
    %461 = vmatprep.subr.mxu0 0.0
    %462 = vmatpush2.msra.mxu0 0.0
    %463 = vmatprep.subr.mxu0 0.0
    %464 = vmatpush2.msra.mxu0 0.0
    %465 = vmatprep.mubr.f32.mxu0 0.0
    %466 = vmatmul.mubr.f32.gmra.mxu0 %v399
    %v467 = vpop.f32.mrf.mxu0
    %v468 = vadd.f32 0.0, %v467
    %v469 = vpop.f32.mrf.mxu0
    %470 = vdwg.mxu0
    %v471 = vadd.f32 %v146, %v468
    %v472 = vxor.u32 %v471, 2147483648
    %v473 = vmul.f32 %v472, 1.442695
    %v474 = vpow.pop %v473
    %v475 = vadd.f32 %v474, 1.0
    %v476 = vrcp.pop %v475
    %v477 = vmul.f32 1.0, %v476
    %v478 = vtanh.pop %v471
    %v479 = vmul.f32 %v477, %v389
    %481 = vrot.lane.b32.xlu0 %v478, 80
    %v482 = vpop.permute.xlu0 %481
    %v484 = vmul.f32 %v477, %v482
    %486 = vrot.lane.b32.xlu0 %v484, 16
    %v487 = vpop.permute.xlu0 %486
    %v489 = vadd.f32 %v479, %v487
    %v490 = vtanh.pop %v489
    %492 = vrot.lane.b32.xlu0 %v490, 16
    %v493 = vpop.permute.xlu0 %492
    %v495 = vmul.f32 %v477, %v493
    %497 = vrot.lane.b32.xlu0 %v495, 96
    %v498 = vpop.permute.xlu0 %497
    %v499 = vsel %vm185, %v498, 0
    %501 = vmatprep.subr.mxu0 0.0
    %502 = vmatpush1.msra.mxu0 0.0
    %503 = vmatprep.subr.mxu0 0.0
    %504 = vmatpush1.msra.mxu0 0.0
    %505 = vmatprep.subr.mxu0 0.0
    %506 = vmatpush1.msra.mxu0 0.0
    %507 = vmatprep.subr.mxu0 0.0
    %508 = vmatpush1.msra.mxu0 0.0
    %509 = vmatprep.subr.mxu0 0.0
    %510 = vmatpush1.msra.mxu0 0.0
    %511 = vmatprep.subr.mxu0 0.0
    %512 = vmatpush1.msra.mxu0 0.0
    %513 = vmatprep.subr.mxu0 0.0
    %514 = vmatpush1.msra.mxu0 0.0
    %515 = vmatprep.subr.mxu0 0.0
    %516 = vmatpush1.msra.mxu0 0.0
    %517 = vmatprep.subr.mxu0 0.0
    %518 = vmatpush1.msra.mxu0 0.0
    %519 = vmatprep.subr.mxu0 0.0
    %520 = vmatpush1.msra.mxu0 0.0
    %521 = vmatprep.subr.mxu0 0.0
    %522 = vmatpush1.msra.mxu0 0.0
    %523 = vmatprep.subr.mxu0 0.0
    %524 = vmatpush1.msra.mxu0 0.0
    %525 = vmatprep.subr.mxu0 0.0
    %526 = vmatpush1.msra.mxu0 0.0
    %527 = vmatprep.subr.mxu0 0.0
    %528 = vmatpush1.msra.mxu0 0.0
    %529 = vmatprep.subr.mxu0 0.0
    %530 = vmatpush1.msra.mxu0 %v180
    %531 = vmatprep.subr.mxu0 0.0
    %532 = vmatpush1.msra.mxu0 %v179
    %533 = vmatprep.subr.mxu0 0.0
    %534 = vmatpush2.msra.mxu0 0.0
    %535 = vmatprep.subr.mxu0 0.0
    %536 = vmatpush2.msra.mxu0 0.0
    %537 = vmatprep.subr.mxu0 0.0
    %538 = vmatpush2.msra.mxu0 0.0
    %539 = vmatprep.subr.mxu0 0.0
    %540 = vmatpush2.msra.mxu0 0.0
    %541 = vmatprep.subr.mxu0 0.0
    %542 = vmatpush2.msra.mxu0 0.0
    %543 = vmatprep.subr.mxu0 0.0
    %544 = vmatpush2.msra.mxu0 0.0
    %545 = vmatprep.subr.mxu0 0.0
    %546 = vmatpush2.msra.mxu0 0.0
    %547 = vmatprep.subr.mxu0 0.0
    %548 = vmatpush2.msra.mxu0 0.0
    %549 = vmatprep.subr.mxu0 0.0
    %550 = vmatpush2.msra.mxu0 0.0
    %551 = vmatprep.subr.mxu0 0.0
    %552 = vmatpush2.msra.mxu0 0.0
    %553 = vmatprep.subr.mxu0 0.0
    %554 = vmatpush2.msra.mxu0 0.0
    %555 = vmatprep.subr.mxu0 0.0
    %556 = vmatpush2.msra.mxu0 0.0
    %557 = vmatprep.subr.mxu0 0.0
    %558 = vmatpush2.msra.mxu0 0.0
    %559 = vmatprep.subr.mxu0 0.0
    %560 = vmatpush2.msra.mxu0 0.0
    %561 = vmatprep.subr.mxu0 0.0
    %562 = vmatpush2.msra.mxu0 0.0
    %563 = vmatprep.subr.mxu0 0.0
    %564 = vmatpush2.msra.mxu0 0.0
    %565 = vmatprep.mubr.f32.mxu0 0.0
    %566 = vmatmul.mubr.f32.gmra.mxu0 %v499
    %v567 = vpop.f32.mrf.mxu0
    %v568 = vadd.f32 0.0, %v567
    %v569 = vpop.f32.mrf.mxu0
    %570 = vdwg.mxu0
    %v571 = vadd.f32 %v151, %v568
    %v572 = vxor.u32 %v571, 2147483648
    %v573 = vmul.f32 %v572, 1.442695
    %v574 = vpow.pop %v573
    %v575 = vadd.f32 %v574, 1.0
    %v576 = vrcp.pop %v575
    %v577 = vmul.f32 1.0, %v576
    %v578 = vtanh.pop %v571
    %v579 = vmul.f32 %v577, %v489
    %581 = vrot.lane.b32.xlu0 %v578, 80
    %v582 = vpop.permute.xlu0 %581
    %v584 = vmul.f32 %v577, %v582
    %586 = vrot.lane.b32.xlu0 %v584, 16
    %v587 = vpop.permute.xlu0 %586
    %v589 = vadd.f32 %v579, %v587
    %v590 = vtanh.pop %v589
    %592 = vrot.lane.b32.xlu0 %v590, 16
    %v593 = vpop.permute.xlu0 %592
    %v595 = vmul.f32 %v577, %v593
    %597 = vrot.lane.b32.xlu0 %v595, 96
    %v598 = vpop.permute.xlu0 %597
    %v599 = vsel %vm185, %v598, 0
    %601 = vmatprep.subr.mxu0 0.0
    %602 = vmatpush1.msra.mxu0 0.0
    %603 = vmatprep.subr.mxu0 0.0
    %604 = vmatpush1.msra.mxu0 0.0
    %605 = vmatprep.subr.mxu0 0.0
    %606 = vmatpush1.msra.mxu0 0.0
    %607 = vmatprep.subr.mxu0 0.0
    %608 = vmatpush1.msra.mxu0 0.0
    %609 = vmatprep.subr.mxu0 0.0
    %610 = vmatpush1.msra.mxu0 0.0
    %611 = vmatprep.subr.mxu0 0.0
    %612 = vmatpush1.msra.mxu0 0.0
    %613 = vmatprep.subr.mxu0 0.0
    %614 = vmatpush1.msra.mxu0 0.0
    %615 = vmatprep.subr.mxu0 0.0
    %616 = vmatpush1.msra.mxu0 0.0
    %617 = vmatprep.subr.mxu0 0.0
    %618 = vmatpush1.msra.mxu0 0.0
    %619 = vmatprep.subr.mxu0 0.0
    %620 = vmatpush1.msra.mxu0 0.0
    %621 = vmatprep.subr.mxu0 0.0
    %622 = vmatpush1.msra.mxu0 0.0
    %623 = vmatprep.subr.mxu0 0.0
    %624 = vmatpush1.msra.mxu0 0.0
    %625 = vmatprep.subr.mxu0 0.0
    %626 = vmatpush1.msra.mxu0 0.0
    %627 = vmatprep.subr.mxu0 0.0
    %628 = vmatpush1.msra.mxu0 0.0
    %629 = vmatprep.subr.mxu0 0.0
    %630 = vmatpush1.msra.mxu0 %v180
    %631 = vmatprep.subr.mxu0 0.0
    %632 = vmatpush1.msra.mxu0 %v179
    %633 = vmatprep.subr.mxu0 0.0
    %634 = vmatpush2.msra.mxu0 0.0
    %635 = vmatprep.subr.mxu0 0.0
    %636 = vmatpush2.msra.mxu0 0.0
    %637 = vmatprep.subr.mxu0 0.0
    %638 = vmatpush2.msra.mxu0 0.0
    %639 = vmatprep.subr.mxu0 0.0
    %640 = vmatpush2.msra.mxu0 0.0
    %641 = vmatprep.subr.mxu0 0.0
    %642 = vmatpush2.msra.mxu0 0.0
    %643 = vmatprep.subr.mxu0 0.0
    %644 = vmatpush2.msra.mxu0 0.0
    %645 = vmatprep.subr.mxu0 0.0
    %646 = vmatpush2.msra.mxu0 0.0
    %647 = vmatprep.subr.mxu0 0.0
    %648 = vmatpush2.msra.mxu0 0.0
    %649 = vmatprep.subr.mxu0 0.0
    %650 = vmatpush2.msra.mxu0 0.0
    %651 = vmatprep.subr.mxu0 0.0
    %652 = vmatpush2.msra.mxu0 0.0
    %653 = vmatprep.subr.mxu0 0.0
    %654 = vmatpush2.msra.mxu0 0.0
    %655 = vmatprep.subr.mxu0 0.0
    %656 = vmatpush2.msra.mxu0 0.0
    %657 = vmatprep.subr.mxu0 0.0
    %658 = vmatpush2.msra.mxu0 0.0
    %659 = vmatprep.subr.mxu0 0.0
    %660 = vmatpush2.msra.mxu0 0.0
    %661 = vmatprep.subr.mxu0 0.0
    %662 = vmatpush2.msra.mxu0 0.0
    %663 = vmatprep.subr.mxu0 0.0
    %664 = vmatpush2.msra.mxu0 0.0
    %665 = vmatprep.mubr.f32.mxu0 0.0
    %666 = vmatmul.mubr.f32.gmra.mxu0 %v599
    %v667 = vpop.f32.mrf.mxu0
    %v668 = vadd.f32 0.0, %v667
    %v669 = vpop.f32.mrf.mxu0
    %670 = vdwg.mxu0
    %v671 = vadd.f32 %v156, %v668
    %v672 = vxor.u32 %v671, 2147483648
    %v673 = vmul.f32 %v672, 1.442695
    %v674 = vpow.pop %v673
    %v675 = vadd.f32 %v674, 1.0
    %v676 = vrcp.pop %v675
    %v677 = vmul.f32 1.0, %v676
    %v678 = vtanh.pop %v671
    %v679 = vmul.f32 %v677, %v589
    %681 = vrot.lane.b32.xlu0 %v678, 80
    %v682 = vpop.permute.xlu0 %681
    %v684 = vmul.f32 %v677, %v682
    %686 = vrot.lane.b32.xlu0 %v684, 16
    %v687 = vpop.permute.xlu0 %686
    %v689 = vadd.f32 %v679, %v687
    %v690 = vtanh.pop %v689
    %692 = vrot.lane.b32.xlu0 %v690, 16
    %v693 = vpop.permute.xlu0 %692
    %v695 = vmul.f32 %v677, %v693
    %697 = vrot.lane.b32.xlu0 %v695, 96
    %v698 = vpop.permute.xlu0 %697
    %v699 = vsel %vm185, %v698, 0
    %701 = vmatprep.subr.mxu0 0.0
    %702 = vmatpush1.msra.mxu0 0.0
    %703 = vmatprep.subr.mxu0 0.0
    %704 = vmatpush1.msra.mxu0 0.0
    %705 = vmatprep.subr.mxu0 0.0
    %706 = vmatpush1.msra.mxu0 0.0
    %707 = vmatprep.subr.mxu0 0.0
    %708 = vmatpush1.msra.mxu0 0.0
    %709 = vmatprep.subr.mxu0 0.0
    %710 = vmatpush1.msra.mxu0 0.0
    %711 = vmatprep.subr.mxu0 0.0
    %712 = vmatpush1.msra.mxu0 0.0
    %713 = vmatprep.subr.mxu0 0.0
    %714 = vmatpush1.msra.mxu0 0.0
    %715 = vmatprep.subr.mxu0 0.0
    %716 = vmatpush1.msra.mxu0 0.0
    %717 = vmatprep.subr.mxu0 0.0
    %718 = vmatpush1.msra.mxu0 0.0
    %719 = vmatprep.subr.mxu0 0.0
    %720 = vmatpush1.msra.mxu0 0.0
    %721 = vmatprep.subr.mxu0 0.0
    %722 = vmatpush1.msra.mxu0 0.0
    %723 = vmatprep.subr.mxu0 0.0
    %724 = vmatpush1.msra.mxu0 0.0
    %725 = vmatprep.subr.mxu0 0.0
    %726 = vmatpush1.msra.mxu0 0.0
    %727 = vmatprep.subr.mxu0 0.0
    %728 = vmatpush1.msra.mxu0 0.0
    %729 = vmatprep.subr.mxu0 0.0
    %730 = vmatpush1.msra.mxu0 %v180
    %731 = vmatprep.subr.mxu0 0.0
    %732 = vmatpush1.msra.mxu0 %v179
    %733 = vmatprep.subr.mxu0 0.0
    %734 = vmatpush2.msra.mxu0 0.0
    %735 = vmatprep.subr.mxu0 0.0
    %736 = vmatpush2.msra.mxu0 0.0
    %737 = vmatprep.subr.mxu0 0.0
    %738 = vmatpush2.msra.mxu0 0.0
    %739 = vmatprep.subr.mxu0 0.0
    %740 = vmatpush2.msra.mxu0 0.0
    %741 = vmatprep.subr.mxu0 0.0
    %742 = vmatpush2.msra.mxu0 0.0
    %743 = vmatprep.subr.mxu0 0.0
    %744 = vmatpush2.msra.mxu0 0.0
    %745 = vmatprep.subr.mxu0 0.0
    %746 = vmatpush2.msra.mxu0 0.0
    %747 = vmatprep.subr.mxu0 0.0
    %748 = vmatpush2.msra.mxu0 0.0
    %749 = vmatprep.subr.mxu0 0.0
    %750 = vmatpush2.msra.mxu0 0.0
    %751 = vmatprep.subr.mxu0 0.0
    %752 = vmatpush2.msra.mxu0 0.0
    %753 = vmatprep.subr.mxu0 0.0
    %754 = vmatpush2.msra.mxu0 0.0
    %755 = vmatprep.subr.mxu0 0.0
    %756 = vmatpush2.msra.mxu0 0.0
    %757 = vmatprep.subr.mxu0 0.0
    %758 = vmatpush2.msra.mxu0 0.0
    %759 = vmatprep.subr.mxu0 0.0
    %760 = vmatpush2.msra.mxu0 0.0
    %761 = vmatprep.subr.mxu0 0.0
    %762 = vmatpush2.msra.mxu0 0.0
    %763 = vmatprep.subr.mxu0 0.0
    %764 = vmatpush2.msra.mxu0 0.0
    %765 = vmatprep.mubr.f32.mxu0 0.0
    %766 = vmatmul.mubr.f32.gmra.mxu0 %v699
    %v767 = vpop.f32.mrf.mxu0
    %v768 = vadd.f32 0.0, %v767
    %v769 = vpop.f32.mrf.mxu0
    %770 = vdwg.mxu0
    %v771 = vadd.f32 %v161, %v768
    %v772 = vxor.u32 %v771, 2147483648
    %v773 = vmul.f32 %v772, 1.442695
    %v774 = vpow.pop %v773
    %v775 = vadd.f32 %v774, 1.0
    %v776 = vrcp.pop %v775
    %v777 = vmul.f32 1.0, %v776
    %v778 = vtanh.pop %v771
    %v779 = vmul.f32 %v777, %v689
    %781 = vrot.lane.b32.xlu0 %v778, 80
    %v782 = vpop.permute.xlu0 %781
    %v784 = vmul.f32 %v777, %v782
    %786 = vrot.lane.b32.xlu0 %v784, 16
    %v787 = vpop.permute.xlu0 %786
    %v789 = vadd.f32 %v779, %v787
    %v790 = vtanh.pop %v789
    %792 = vrot.lane.b32.xlu0 %v790, 16
    %v793 = vpop.permute.xlu0 %792
    %v795 = vmul.f32 %v777, %v793
    %797 = vrot.lane.b32.xlu0 %v795, 96
    %v798 = vpop.permute.xlu0 %797
    %v799 = vsel %vm185, %v798, 0
    %801 = vmatprep.subr.mxu0 0.0
    %802 = vmatpush1.msra.mxu0 0.0
    %803 = vmatprep.subr.mxu0 0.0
    %804 = vmatpush1.msra.mxu0 0.0
    %805 = vmatprep.subr.mxu0 0.0
    %806 = vmatpush1.msra.mxu0 0.0
    %807 = vmatprep.subr.mxu0 0.0
    %808 = vmatpush1.msra.mxu0 0.0
    %809 = vmatprep.subr.mxu0 0.0
    %810 = vmatpush1.msra.mxu0 0.0
    %811 = vmatprep.subr.mxu0 0.0
    %812 = vmatpush1.msra.mxu0 0.0
    %813 = vmatprep.subr.mxu0 0.0
    %814 = vmatpush1.msra.mxu0 0.0
    %815 = vmatprep.subr.mxu0 0.0
    %816 = vmatpush1.msra.mxu0 0.0
    %817 = vmatprep.subr.mxu0 0.0
    %818 = vmatpush1.msra.mxu0 0.0
    %819 = vmatprep.subr.mxu0 0.0
    %820 = vmatpush1.msra.mxu0 0.0
    %821 = vmatprep.subr.mxu0 0.0
    %822 = vmatpush1.msra.mxu0 0.0
    %823 = vmatprep.subr.mxu0 0.0
    %824 = vmatpush1.msra.mxu0 0.0
    %825 = vmatprep.subr.mxu0 0.0
    %826 = vmatpush1.msra.mxu0 0.0
    %827 = vmatprep.subr.mxu0 0.0
    %828 = vmatpush1.msra.mxu0 0.0
    %829 = vmatprep.subr.mxu0 0.0
    %830 = vmatpush1.msra.mxu0 %v180
    %831 = vmatprep.subr.mxu0 0.0
    %832 = vmatpush1.msra.mxu0 %v179
    %833 = vmatprep.subr.mxu0 0.0
    %834 = vmatpush2.msra.mxu0 0.0
    %835 = vmatprep.subr.mxu0 0.0
    %836 = vmatpush2.msra.mxu0 0.0
    %837 = vmatprep.subr.mxu0 0.0
    %838 = vmatpush2.msra.mxu0 0.0
    %839 = vmatprep.subr.mxu0 0.0
    %840 = vmatpush2.msra.mxu0 0.0
    %841 = vmatprep.subr.mxu0 0.0
    %842 = vmatpush2.msra.mxu0 0.0
    %843 = vmatprep.subr.mxu0 0.0
    %844 = vmatpush2.msra.mxu0 0.0
    %845 = vmatprep.subr.mxu0 0.0
    %846 = vmatpush2.msra.mxu0 0.0
    %847 = vmatprep.subr.mxu0 0.0
    %848 = vmatpush2.msra.mxu0 0.0
    %849 = vmatprep.subr.mxu0 0.0
    %850 = vmatpush2.msra.mxu0 0.0
    %851 = vmatprep.subr.mxu0 0.0
    %852 = vmatpush2.msra.mxu0 0.0
    %853 = vmatprep.subr.mxu0 0.0
    %854 = vmatpush2.msra.mxu0 0.0
    %855 = vmatprep.subr.mxu0 0.0
    %856 = vmatpush2.msra.mxu0 0.0
    %857 = vmatprep.subr.mxu0 0.0
    %858 = vmatpush2.msra.mxu0 0.0
    %859 = vmatprep.subr.mxu0 0.0
    %860 = vmatpush2.msra.mxu0 0.0
    %861 = vmatprep.subr.mxu0 0.0
    %862 = vmatpush2.msra.mxu0 0.0
    %863 = vmatprep.subr.mxu0 0.0
    %864 = vmatpush2.msra.mxu0 0.0
    %865 = vmatprep.mubr.f32.mxu0 0.0
    %866 = vmatmul.mubr.f32.gmra.mxu0 %v799
    %v867 = vpop.f32.mrf.mxu0
    %v868 = vadd.f32 0.0, %v867
    %v869 = vpop.f32.mrf.mxu0
    %870 = vdwg.mxu0
    %v871 = vadd.f32 %v166, %v868
    %v872 = vxor.u32 %v871, 2147483648
    %v873 = vmul.f32 %v872, 1.442695
    %v874 = vpow.pop %v873
    %v875 = vadd.f32 %v874, 1.0
    %v876 = vrcp.pop %v875
    %v877 = vmul.f32 1.0, %v876
    %v878 = vtanh.pop %v871
    %v879 = vmul.f32 %v877, %v789
    %881 = vrot.lane.b32.xlu0 %v878, 80
    %v882 = vpop.permute.xlu0 %881
    %v884 = vmul.f32 %v877, %v882
    %886 = vrot.lane.b32.xlu0 %v884, 16
    %v887 = vpop.permute.xlu0 %886
    %v889 = vadd.f32 %v879, %v887
    %v890 = vtanh.pop %v889
    %892 = vrot.lane.b32.xlu0 %v890, 16
    %v893 = vpop.permute.xlu0 %892
    %v895 = vmul.f32 %v877, %v893
    %897 = vrot.lane.b32.xlu0 %v895, 96
    %v898 = vpop.permute.xlu0 %897
    %v899 = vsel %vm185, %v898, 0
    %901 = vmatprep.subr.mxu0 0.0
    %902 = vmatpush1.msra.mxu0 0.0
    %903 = vmatprep.subr.mxu0 0.0
    %904 = vmatpush1.msra.mxu0 0.0
    %905 = vmatprep.subr.mxu0 0.0
    %906 = vmatpush1.msra.mxu0 0.0
    %907 = vmatprep.subr.mxu0 0.0
    %908 = vmatpush1.msra.mxu0 0.0
    %909 = vmatprep.subr.mxu0 0.0
    %910 = vmatpush1.msra.mxu0 0.0
    %911 = vmatprep.subr.mxu0 0.0
    %912 = vmatpush1.msra.mxu0 0.0
    %913 = vmatprep.subr.mxu0 0.0
    %914 = vmatpush1.msra.mxu0 0.0
    %915 = vmatprep.subr.mxu0 0.0
    %916 = vmatpush1.msra.mxu0 0.0
    %917 = vmatprep.subr.mxu0 0.0
    %918 = vmatpush1.msra.mxu0 0.0
    %919 = vmatprep.subr.mxu0 0.0
    %920 = vmatpush1.msra.mxu0 0.0
    %921 = vmatprep.subr.mxu0 0.0
    %922 = vmatpush1.msra.mxu0 0.0
    %923 = vmatprep.subr.mxu0 0.0
    %924 = vmatpush1.msra.mxu0 0.0
    %925 = vmatprep.subr.mxu0 0.0
    %926 = vmatpush1.msra.mxu0 0.0
    %927 = vmatprep.subr.mxu0 0.0
    %928 = vmatpush1.msra.mxu0 0.0
    %929 = vmatprep.subr.mxu0 0.0
    %930 = vmatpush1.msra.mxu0 %v180
    %931 = vmatprep.subr.mxu0 0.0
    %932 = vmatpush1.msra.mxu0 %v179
    %933 = vmatprep.subr.mxu0 0.0
    %934 = vmatpush2.msra.mxu0 0.0
    %935 = vmatprep.subr.mxu0 0.0
    %936 = vmatpush2.msra.mxu0 0.0
    %937 = vmatprep.subr.mxu0 0.0
    %938 = vmatpush2.msra.mxu0 0.0
    %939 = vmatprep.subr.mxu0 0.0
    %940 = vmatpush2.msra.mxu0 0.0
    %941 = vmatprep.subr.mxu0 0.0
    %942 = vmatpush2.msra.mxu0 0.0
    %943 = vmatprep.subr.mxu0 0.0
    %944 = vmatpush2.msra.mxu0 0.0
    %945 = vmatprep.subr.mxu0 0.0
    %946 = vmatpush2.msra.mxu0 0.0
    %947 = vmatprep.subr.mxu0 0.0
    %948 = vmatpush2.msra.mxu0 0.0
    %949 = vmatprep.subr.mxu0 0.0
    %950 = vmatpush2.msra.mxu0 0.0
    %951 = vmatprep.subr.mxu0 0.0
    %952 = vmatpush2.msra.mxu0 0.0
    %953 = vmatprep.subr.mxu0 0.0
    %954 = vmatpush2.msra.mxu0 0.0
    %955 = vmatprep.subr.mxu0 0.0
    %956 = vmatpush2.msra.mxu0 0.0
    %957 = vmatprep.subr.mxu0 0.0
    %958 = vmatpush2.msra.mxu0 0.0
    %959 = vmatprep.subr.mxu0 0.0
    %960 = vmatpush2.msra.mxu0 0.0
    %961 = vmatprep.subr.mxu0 0.0
    %962 = vmatpush2.msra.mxu0 0.0
    %963 = vmatprep.subr.mxu0 0.0
    %964 = vmatpush2.msra.mxu0 0.0
    %965 = vmatprep.mubr.f32.mxu0 0.0
    %966 = vmatmul.mubr.f32.gmra.mxu0 %v899
    %v967 = vpop.f32.mrf.mxu0
    %v968 = vadd.f32 0.0, %v967
    %v969 = vpop.f32.mrf.mxu0
    %970 = vdwg.mxu0
    %v971 = vadd.f32 %v171, %v968
    %v972 = vxor.u32 %v971, 2147483648
    %v973 = vmul.f32 %v972, 1.442695
    %v974 = vpow.pop %v973
    %v975 = vadd.f32 %v974, 1.0
    %v976 = vrcp.pop %v975
    %v977 = vmul.f32 1.0, %v976
    %v978 = vtanh.pop %v971
    %v979 = vmul.f32 %v977, %v889
    %981 = vrot.lane.b32.xlu0 %v978, 80
    %v982 = vpop.permute.xlu0 %981
    %v984 = vmul.f32 %v977, %v982
    %986 = vrot.lane.b32.xlu0 %v984, 16
    %v987 = vpop.permute.xlu0 %986
    %v989 = vadd.f32 %v979, %v987
    %v990 = vtanh.pop %v989
    %992 = vrot.lane.b32.xlu0 %v990, 16
    %v993 = vpop.permute.xlu0 %992
    %v995 = vmul.f32 %v977, %v993
    %997 = vrot.lane.b32.xlu0 %v995, 96
    %v998 = vpop.permute.xlu0 %997
    %v999 = vsel %vm185, %v998, 0
    %1001 = vmatprep.subr.mxu0 0.0
    %1002 = vmatpush1.msra.mxu0 0.0
    %1003 = vmatprep.subr.mxu0 0.0
    %1004 = vmatpush1.msra.mxu0 0.0
    %1005 = vmatprep.subr.mxu0 0.0
    %1006 = vmatpush1.msra.mxu0 0.0
    %1007 = vmatprep.subr.mxu0 0.0
    %1008 = vmatpush1.msra.mxu0 0.0
    %1009 = vmatprep.subr.mxu0 0.0
    %1010 = vmatpush1.msra.mxu0 0.0
    %1011 = vmatprep.subr.mxu0 0.0
    %1012 = vmatpush1.msra.mxu0 0.0
    %1013 = vmatprep.subr.mxu0 0.0
    %1014 = vmatpush1.msra.mxu0 0.0
    %1015 = vmatprep.subr.mxu0 0.0
    %1016 = vmatpush1.msra.mxu0 0.0
    %1017 = vmatprep.subr.mxu0 0.0
    %1018 = vmatpush1.msra.mxu0 0.0
    %1019 = vmatprep.subr.mxu0 0.0
    %1020 = vmatpush1.msra.mxu0 0.0
    %1021 = vmatprep.subr.mxu0 0.0
    %1022 = vmatpush1.msra.mxu0 0.0
    %1023 = vmatprep.subr.mxu0 0.0
    %1024 = vmatpush1.msra.mxu0 0.0
    %1025 = vmatprep.subr.mxu0 0.0
    %1026 = vmatpush1.msra.mxu0 0.0
    %1027 = vmatprep.subr.mxu0 0.0
    %1028 = vmatpush1.msra.mxu0 0.0
    %1029 = vmatprep.subr.mxu0 0.0
    %1030 = vmatpush1.msra.mxu0 %v180
    %1031 = vmatprep.subr.mxu0 0.0
    %1032 = vmatpush1.msra.mxu0 %v179
    %1033 = vmatprep.subr.mxu0 0.0
    %1034 = vmatpush2.msra.mxu0 0.0
    %1035 = vmatprep.subr.mxu0 0.0
    %1036 = vmatpush2.msra.mxu0 0.0
    %1037 = vmatprep.subr.mxu0 0.0
    %1038 = vmatpush2.msra.mxu0 0.0
    %1039 = vmatprep.subr.mxu0 0.0
    %1040 = vmatpush2.msra.mxu0 0.0
    %1041 = vmatprep.subr.mxu0 0.0
    %1042 = vmatpush2.msra.mxu0 0.0
    %1043 = vmatprep.subr.mxu0 0.0
    %1044 = vmatpush2.msra.mxu0 0.0
    %1045 = vmatprep.subr.mxu0 0.0
    %1046 = vmatpush2.msra.mxu0 0.0
    %1047 = vmatprep.subr.mxu0 0.0
    %1048 = vmatpush2.msra.mxu0 0.0
    %1049 = vmatprep.subr.mxu0 0.0
    %1050 = vmatpush2.msra.mxu0 0.0
    %1051 = vmatprep.subr.mxu0 0.0
    %1052 = vmatpush2.msra.mxu0 0.0
    %1053 = vmatprep.subr.mxu0 0.0
    %1054 = vmatpush2.msra.mxu0 0.0
    %1055 = vmatprep.subr.mxu0 0.0
    %1056 = vmatpush2.msra.mxu0 0.0
    %1057 = vmatprep.subr.mxu0 0.0
    %1058 = vmatpush2.msra.mxu0 0.0
    %1059 = vmatprep.subr.mxu0 0.0
    %1060 = vmatpush2.msra.mxu0 0.0
    %1061 = vmatprep.subr.mxu0 0.0
    %1062 = vmatpush2.msra.mxu0 0.0
    %1063 = vmatprep.subr.mxu0 0.0
    %1064 = vmatpush2.msra.mxu0 0.0
    %1065 = vmatprep.mubr.f32.mxu0 0.0
    %1066 = vmatmul.mubr.f32.gmra.mxu0 %v999
    %v1067 = vpop.f32.mrf.mxu0
    %v1068 = vadd.f32 0.0, %v1067
    %v1069 = vpop.f32.mrf.mxu0
    %1070 = vdwg.mxu0
    %v1071 = vadd.f32 %v176, %v1068
    %v1072 = vxor.u32 %v1071, 2147483648
    %v1073 = vmul.f32 %v1072, 1.442695
    %v1074 = vpow.pop %v1073
    %v1075 = vadd.f32 %v1074, 1.0
    %v1076 = vrcp.pop %v1075
    %v1077 = vmul.f32 1.0, %v1076
    %v1078 = vtanh.pop %v1071
    %v1079 = vmul.f32 %v1077, %v989
    %1081 = vrot.lane.b32.xlu0 %v1078, 80
    %v1082 = vpop.permute.xlu0 %1081
    %v1084 = vmul.f32 %v1077, %v1082
    %1086 = vrot.lane.b32.xlu0 %v1084, 16
    %v1087 = vpop.permute.xlu0 %1086
    %v1089 = vadd.f32 %v1079, %v1087
    %v1090 = vtanh.pop %v1089
    %1092 = vrot.lane.b32.xlu0 %v1090, 16
    %v1093 = vpop.permute.xlu0 %1092
    %v1095 = vmul.f32 %v1077, %v1093
    %1097 = vrot.lane.b32.xlu0 %v1095, 96
    %v1098 = vpop.permute.xlu0 %1097
    %1101 = vrot.lane.b32.xlu0 %v291, 48
    %v1102 = vpop.permute.xlu0 %1101
    %v1104 = vsel %vm185, %v1098, %v1102
    %vm1105 = vcmask 261120
    %1106 = vst.msk [vmem:[#allocation2] sm:$0xff] %vm1105, %v1104
    // Predicated region
    $region38: #{tpu_custom_call.1} parent=1 // pred_check
      _
    $region39: #{tpu_custom_call.1} parent=1 // pred_check_branch
      %1108 = sbr.rel (0) target = $region41
    $region40: #{tpu_custom_call.1} parent=1 // pred_region
      %s1110 = ssub.s32 128, 128
      %1111 = vsyncadd [#allocation3], %s1110
      %s1113 = sshll.u32 [#allocation2], 4
      %s1114 = int_to_ptr.vmem [resolvable:$true] %s1113
      %1116 = dma.vmem_to_hbm [thread:$0]  %s1114, 128, %s9, [#allocation3]
    $region41: #{tpu_custom_call.1} parent=1 // pred_fallthru
      _
    // Predicated region
    $region42: #{tpu_custom_call.1} parent=1 // pred_check
      _
    $region43: #{tpu_custom_call.1} parent=1 // pred_check_branch
      %1118 = sbr.rel (0) target = $region45
    $region44: #{tpu_custom_call.1} parent=1 // pred_region
      %1119 = dma.done [#allocation3], 128
    $region45: #{tpu_custom_call.1} parent=1 // pred_fallthru
      _
    %1120 = vsyncpa [#allocation3], 1

</llo_original>
